<compile_context>
chip_gen: v5e
topology: v5e:2x2
jax: 0.10.0
libtpu: 0.0.40
codegen_flags: <defaults>
</compile_context>

<pallas_src>
import functools

import jax
import jax.numpy as jnp
from jax.experimental import pallas as pl
from jax.experimental.pallas import tpu as pltpu


def pcnn_kernel(xu_ref, w_ref, b_ref, bnd_ref, wr_ref, out_ref, *, b_blk):
    m_blk = xu_ref.shape[0]
    h3 = w_ref.shape[1]
    l_out = m_blk // b_blk

    # One bf16 MXU matmul over the whole batch block, f32 accumulation.
    conv = jnp.dot(xu_ref[...], w_ref[...], preferred_element_type=jnp.float32)
    conv = conv.reshape(b_blk, l_out, h3)

    # Vectorized piecewise mask for the whole block (no per-example unroll):
    #   piece(b, l) = #{boundary_k(b) <= l}  in {0, 1, 2}
    # Column j of conv holds hidden unit j//3 for piece j%3 (weights were
    # replicated 3x along N in the wrapper), so adding 100.0 where
    # piece == j%3 reproduces torch's `100 * one_hot(piece, 3)` mask exactly.
    pos = jax.lax.broadcasted_iota(jnp.int32, (b_blk, l_out), 1)
    b0 = bnd_ref[:, 0:1]                                  # [b_blk, 1] int32
    b1 = bnd_ref[:, 1:2]
    piece = (pos >= b0).astype(jnp.int32) + (pos >= b1).astype(jnp.int32)
    lane_p = jax.lax.broadcasted_iota(jnp.int32, (1, 1, h3), 2) % 3
    mask_add = jnp.where(piece[:, :, None] == lane_p, 100.0, 0.0)

    # Single cross-sublane max per block; bias added after the pool
    # (max over rows commutes with a per-column constant).
    pooled = jnp.max(conv + mask_add, axis=1) - 100.0 + b_ref[...]

    # [pooled | wa | rel] -> one lane-dense (multiple-of-128) ReLU'd store.
    out_ref[...] = jnp.maximum(
        jnp.concatenate([pooled, wr_ref[...]], axis=1), 0.0)


def _pick_b_blk(B):
    """Examples per grid step: 32-64 when B is large, multiple of 8, and keep
    the grid length >= 2 (v7x has 2 TensorCores sharding the parallel axis)."""
    if B <= 8:
        return B
    for cand in (64, 32, 16, 8):
        if B >= 2 * cand:
            return cand
    return 8


@jax.jit
def pcnn_forward(word, wa, rel, bounds, weight, bias):
    B, L, Wd = word.shape
    H, _, KW, _ = weight.shape
    L_out = L + 2 - KW + 1                    # Conv2d padding=(1, 0), stride=1
    # The piecewise mask is indexed by conv-output position while `bounds` are
    # token positions; these coincide only because padding=(1,0), KW=3 gives
    # L_out == L (as in the reference module).  Guard it explicitly.
    assert L_out == L, "piecewise-mask indexing assumes L_out == L"

    Dwa, Drel = wa.shape[1], rel.shape[1]
    H3 = 3 * H
    out_w = H3 + Dwa + Drel
    out_w_pad = -(-out_w // 128) * 128        # keep the output store lane-dense
    wr_pad = out_w_pad - H3

    b_blk = _pick_b_blk(B)
    B_pad = -(-B // b_blk) * b_blk

    def pad_b(x):
        if x.shape[0] == B_pad:
            return x
        return jnp.pad(x, [(0, B_pad - x.shape[0])] + [(0, 0)] * (x.ndim - 1))

    word_p = pad_b(word)
    wa_p, rel_p = pad_b(wa), pad_b(rel)
    # Padded rows get bounds (0, 0) => piece == 2 everywhere; their output is
    # garbage-but-finite and sliced off below.  Bounds must be >= 0.
    bounds_p = pad_b(bounds.astype(jnp.int32))

    # --- glue (tiny, fused under jit): im2col + fold batch into matmul M dim.
    # For production B*L on v5e/v6e, move this im2col into the kernel (KW
    # accumulated matmuls on a [b_blk, L+2, Wd] block) to cut HBM reads ~3x.
    padded = jnp.pad(word_p, ((0, 0), (1, 1), (0, 0)))
    x_unf = jnp.concatenate([padded[:, k:k + L_out, :] for k in range(KW)],
                            axis=-1)                       # [B_pad, L_out, KW*Wd]
    xu2d = x_unf.reshape(B_pad * L_out, KW * Wd).astype(jnp.bfloat16)

    # Replicate weight columns 3x so matmul column j == (h = j//3, p = j%3).
    wmat = weight.reshape(H, KW * Wd).T                       # [KW*Wd, H]
    w_wide = jnp.repeat(wmat, 3, axis=1).astype(jnp.bfloat16)  # [KW*Wd, 3H]
    b_wide = jnp.repeat(bias, 3)[None, :].astype(jnp.float32)  # [1, 3H]

    wr = jnp.concatenate([wa_p, rel_p], axis=1).astype(jnp.float32)
    if wr.shape[1] != wr_pad:
        wr = jnp.pad(wr, ((0, 0), (0, wr_pad - wr.shape[1])))  # [B_pad, wr_pad]

    m_blk = b_blk * L_out
    grid = (B_pad // b_blk,)

    cost = pl.CostEstimate(
        flops=2 * (B_pad * L_out) * (KW * Wd) * H3,
        transcendentals=0,
        bytes_accessed=(xu2d.size * 2 + w_wide.size * 2 + b_wide.size * 4
                        + bounds_p.size * 4 + wr.size * 4
                        + B_pad * out_w_pad * 4),
    )

    grid_spec = pltpu.PrefetchScalarGridSpec(
        num_scalar_prefetch=0,
        grid=grid,
        in_specs=[
            pl.BlockSpec((m_blk, KW * Wd), lambda i: (i, 0)),   # activations
            pl.BlockSpec((KW * Wd, H3), lambda i: (0, 0)),      # weights (resident)
            pl.BlockSpec((1, H3), lambda i: (0, 0)),            # bias
            pl.BlockSpec((b_blk, 2), lambda i: (i, 0)),         # segment bounds
            pl.BlockSpec((b_blk, wr_pad), lambda i: (i, 0)),    # [wa | rel]
        ],
        out_specs=pl.BlockSpec((b_blk, out_w_pad), lambda i: (i, 0)),
    )

    out = pl.pallas_call(
        functools.partial(pcnn_kernel, b_blk=b_blk),
        out_shape=jax.ShapeDtypeStruct((B_pad, out_w_pad), jnp.float32),
        grid_spec=grid_spec,
        compiler_params=pltpu.CompilerParams(
            dimension_semantics=("parallel",)),
        cost_estimate=cost,
    )(xu2d, w_wide, b_wide, bounds_p, wr)

    return out[:B, :out_w]


def pcnn_ref(word, wa, rel, mask, weight, bias):
    """Pure-JAX reference mirroring the PyTorch forward (NCHW conv, f32)."""
    B = word.shape[0]
    x = word[:, None, :, :]                                   # [B, 1, L, W]
    conv = jax.lax.conv_general_dilated(
        x, weight, window_strides=(1, 1), padding=((1, 1), (0, 0)),
        dimension_numbers=("NCHW", "OIHW", "NCHW"),
        precision=jax.lax.Precision.HIGHEST)
    conv = conv + bias[None, :, None, None]                   # [B, H, L_out, 1]
    m = mask[:, None, :, :]                                   # [B, 1, L_out, 3]
    pooled = jnp.max(m + conv, axis=2) - 100.0                # [B, H, 3]
    flat = pooled.reshape(B, -1)                              # [B, H*3], h*3+p
    out = jnp.concatenate([flat, wa, rel], axis=1)
    return jnp.maximum(out, 0.0)


if __name__ == "__main__":
    B, L = 10, 16                      # batch, max_length (exercises padding + grid of 2)
    word_size, pos_size = 8, 4
    Wd = word_size + 2 * pos_size      # 16 = conv input width
    H = 32                             # sen_hidden_size
    KW = 3                             # window_size
    Dwa, Drel = 16, 16                 # widths of wa / rel side inputs

    key = jax.random.PRNGKey(0)
    kw_, kb, kword, kwa, krel, kb0, kb1 = jax.random.split(key, 7)
    weight = 0.1 * jax.random.normal(kw_, (H, 1, KW, Wd), dtype=jnp.float32)
    bias = 0.05 * jax.random.normal(kb, (H,), dtype=jnp.float32)
    word = jax.random.normal(kword, (B, L, Wd), dtype=jnp.float32)
    wa = jax.random.normal(kwa, (B, Dwa), dtype=jnp.float32)
    rel = jax.random.normal(krel, (B, Drel), dtype=jnp.float32)

    # Per-example piecewise segment boundaries (entity positions), b0 < b1.
    b0 = jax.random.randint(kb0, (B,), 1, L // 2)
    b1 = jax.random.randint(kb1, (B,), L // 2, L - 1)
    bounds = jnp.stack([b0, b1], axis=1).astype(jnp.int32)

    # Reference mask [B, L, 3]: 100.0 in the segment a token belongs to
    # (the kernel rebuilds exactly this from `bounds` in VMEM).
    pos = jnp.arange(L)
    piece = ((pos[None, :] >= bounds[:, 0:1]).astype(jnp.int32)
             + (pos[None, :] >= bounds[:, 1:2]).astype(jnp.int32))
    mask = 100.0 * jax.nn.one_hot(piece, 3, dtype=jnp.float32)

    out = pcnn_forward(word, wa, rel, bounds, weight, bias)
    out = jax.block_until_ready(out)
    assert out.shape == (B, 3 * H + Dwa + Drel), out.shape

    # Tight check: reference fed the same bf16-rounded MXU inputs (f32 accumulate),
    # so this isolates kernel structure/pooling/ordering bugs.
    ref_bf16in = pcnn_ref(word.astype(jnp.bfloat16).astype(jnp.float32), wa, rel,
                          mask, weight.astype(jnp.bfloat16).astype(jnp.float32),
                          bias)
    err_tight = float(jnp.max(jnp.abs(out - ref_bf16in)))
    assert jnp.allclose(out, ref_bf16in, rtol=1e-3, atol=1e-3), err_tight

    # Sanity check vs the full-f32 module (difference = bf16 rounding of MXU inputs).
    ref_f32 = pcnn_ref(word, wa, rel, mask, weight, bias)
    err_f32 = float(jnp.max(jnp.abs(out - ref_f32)))
    assert jnp.allclose(out, ref_f32, rtol=5e-2, atol=5e-2), err_f32

    print("KERNEL_OK")
</pallas_src>

<mosaic_0001>
module attributes {stable_mosaic.version = 11 : i64} {
  func.func @pcnn_kernel(%arg0: i32, %arg1: memref<128x48xbf16, #tpu.memory_space<vmem>>, %arg2: memref<48x96xbf16, #tpu.memory_space<vmem>>, %arg3: memref<1x96xf32, #tpu.memory_space<vmem>>, %arg4: memref<8x2xi32, #tpu.memory_space<vmem>>, %arg5: memref<8x32xf32, #tpu.memory_space<vmem>>, %arg6: memref<8x128xf32, #tpu.memory_space<vmem>>) attributes {dimension_semantics = [#tpu.dimension_semantics<parallel>], iteration_bounds = array<i64: 2>, scalar_prefetch = 0 : i64, scratch_operands = 0 : i64, tpu.core_type = #tpu.core_type<tc>, window_params = [{transform_indices = @transform_0, window_bounds = array<i64: 128, 48>}, {pipeline_mode = #tpu.pipeline_mode<synchronous>, transform_indices = @transform_1, window_bounds = array<i64: 48, 96>}, {pipeline_mode = #tpu.pipeline_mode<synchronous>, transform_indices = @transform_2, window_bounds = array<i64: 1, 96>}, {transform_indices = @transform_3, window_bounds = array<i64: 8, 2>}, {transform_indices = @transform_4, window_bounds = array<i64: 8, 32>}, {transform_indices = @transform_5, window_bounds = array<i64: 8, 128>}]} {
    %c0 = arith.constant 0 : index
    %c0_0 = arith.constant 0 : index
    %0 = vector.load %arg1[%c0, %c0_0] : memref<128x48xbf16, #tpu.memory_space<vmem>>, vector<128x48xbf16>
    %c0_1 = arith.constant 0 : index
    %c0_2 = arith.constant 0 : index
    %1 = vector.load %arg2[%c0_1, %c0_2] : memref<48x96xbf16, #tpu.memory_space<vmem>>, vector<48x96xbf16>
    %cst = arith.constant dense<0.000000e+00> : vector<128x96xf32>
    %2 = tpu.matmul %0, %1, %cst {dimension_numbers = #tpu.dot_dimension_numbers<[1], [0], [0], [1], [0, 0, 1, 1], [], []>} : vector<128x48xbf16>, vector<48x96xbf16>, vector<128x96xf32> -> vector<128x96xf32>
    %3 = vector.shape_cast %2 : vector<128x96xf32> to vector<8x16x96xf32>
    %4 = tpu.iota {dimensions = array<i32: 1>} : vector<8x16xi32>
    %c0_3 = arith.constant 0 : index
    %c0_4 = arith.constant 0 : index
    %5 = vector.load %arg4[%c0_3, %c0_4] : memref<8x2xi32, #tpu.memory_space<vmem>>, vector<8x1xi32>
    %c0_5 = arith.constant 0 : index
    %c1 = arith.constant 1 : index
    %6 = vector.load %arg4[%c0_5, %c1] : memref<8x2xi32, #tpu.memory_space<vmem>>, vector<8x1xi32>
    %7 = vector.broadcast %5 : vector<8x1xi32> to vector<8x16xi32>
    %8 = arith.cmpi sge, %4, %7 : vector<8x16xi32>
    %9 = arith.extui %8 : vector<8x16xi1> to vector<8x16xi32>
    %10 = vector.broadcast %6 : vector<8x1xi32> to vector<8x16xi32>
    %11 = arith.cmpi sge, %4, %10 : vector<8x16xi32>
    %12 = arith.extui %11 : vector<8x16xi1> to vector<8x16xi32>
    %13 = arith.addi %9, %12 : vector<8x16xi32>
    %14 = tpu.iota {dimensions = array<i32: 2>} : vector<1x1x96xi32>
    %c3_i32 = arith.constant 3 : i32
    %c0_i32 = arith.constant 0 : i32
    %15 = arith.cmpi eq, %c3_i32, %c0_i32 : i32
    %c1_i32 = arith.constant 1 : i32
    %16 = arith.select %15, %c1_i32, %c3_i32 : i32
    %17 = vector.broadcast %16 : i32 to vector<1x1x96xi32>
    %18 = arith.remsi %14, %17 : vector<1x1x96xi32>
    %c0_i32_6 = arith.constant 0 : i32
    %19 = vector.broadcast %c0_i32_6 : i32 to vector<1x1x96xi32>
    %20 = arith.cmpi ne, %18, %19 : vector<1x1x96xi32>
    %c0_i32_7 = arith.constant 0 : i32
    %21 = vector.broadcast %c0_i32_7 : i32 to vector<1x1x96xi32>
    %22 = arith.cmpi slt, %18, %21 : vector<1x1x96xi32>
    %c0_i32_8 = arith.constant 0 : i32
    %23 = arith.cmpi slt, %16, %c0_i32_8 : i32
    %24 = vector.broadcast %23 : i1 to vector<1x1x96xi1>
    %25 = vector.broadcast %24 : vector<1x1x96xi1> to vector<1x1x96xi1>
    %26 = arith.xori %22, %25 : vector<1x1x96xi1>
    %27 = arith.andi %26, %20 : vector<1x1x96xi1>
    %28 = vector.broadcast %16 : i32 to vector<1x1x96xi32>
    %29 = arith.addi %18, %28 : vector<1x1x96xi32>
    %30 = arith.select %27, %29, %18 : vector<1x1x96xi1>, vector<1x1x96xi32>
    %31 = vector.shape_cast %13 : vector<8x16xi32> to vector<8x16x1xi32>
    %32 = vector.broadcast %31 : vector<8x16x1xi32> to vector<8x16x96xi32>
    %33 = vector.broadcast %30 : vector<1x1x96xi32> to vector<8x16x96xi32>
    %34 = arith.cmpi eq, %32, %33 : vector<8x16x96xi32>
    %cst_9 = arith.constant 1.000000e+02 : f32
    %cst_10 = arith.constant 0.000000e+00 : f32
    %35 = vector.broadcast %cst_9 : f32 to vector<8x16x96xf32>
    %36 = vector.broadcast %cst_10 : f32 to vector<8x16x96xf32>
    %37 = arith.select %34, %35, %36 : vector<8x16x96xi1>, vector<8x16x96xf32>
    %38 = arith.addf %3, %37 : vector<8x16x96xf32>
    %cst_11 = arith.constant dense<0xFF800000> : vector<8x96xf32>
    %39 = vector.multi_reduction <maximumf>, %38, %cst_11 [1] : vector<8x16x96xf32> to vector<8x96xf32>
    %cst_12 = arith.constant 1.000000e+02 : f32
    %40 = vector.broadcast %cst_12 : f32 to vector<8x96xf32>
    %41 = arith.subf %39, %40 : vector<8x96xf32>
    %c0_13 = arith.constant 0 : index
    %c0_14 = arith.constant 0 : index
    %42 = vector.load %arg3[%c0_13, %c0_14] : memref<1x96xf32, #tpu.memory_space<vmem>>, vector<1x96xf32>
    %43 = vector.broadcast %42 : vector<1x96xf32> to vector<8x96xf32>
    %44 = arith.addf %41, %43 : vector<8x96xf32>
    %c0_15 = arith.constant 0 : index
    %c0_16 = arith.constant 0 : index
    %45 = vector.load %arg5[%c0_15, %c0_16] : memref<8x32xf32, #tpu.memory_space<vmem>>, vector<8x32xf32>
    %46 = tpu.concatenate %44, %45 in 1 : vector<8x96xf32>, vector<8x32xf32> -> vector<8x128xf32>
    %cst_17 = arith.constant 0.000000e+00 : f32
    %47 = vector.broadcast %cst_17 : f32 to vector<8x128xf32>
    %48 = arith.maximumf %46, %47 : vector<8x128xf32>
    %c0_18 = arith.constant 0 : index
    %c0_19 = arith.constant 0 : index
    %49 = vector.load %arg6[%c0_18, %c0_19] : memref<8x128xf32, #tpu.memory_space<vmem>>, vector<8x128xf32>
    tpu.vector_store %arg6[%c0_18, %c0_19], %48 {strides = array<i32>} : memref<8x128xf32, #tpu.memory_space<vmem>>, vector<8x128xf32>,
    return
  }
  func.func @transform_0(%arg0: i32) -> (i32, i32) {
    %c0_i32 = arith.constant 0 : i32
    %c0_i32_0 = arith.constant 0 : i32
    return %arg0, %c0_i32 : i32, i32
  }
  func.func @transform_1(%arg0: i32) -> (i32, i32) {
    %c0_i32 = arith.constant 0 : i32
    %c0_i32_0 = arith.constant 0 : i32
    %c0_i32_1 = arith.constant 0 : i32
    return %c0_i32, %c0_i32_0 : i32, i32
  }
  func.func @transform_2(%arg0: i32) -> (i32, i32) {
    %c0_i32 = arith.constant 0 : i32
    %c0_i32_0 = arith.constant 0 : i32
    %c0_i32_1 = arith.constant 0 : i32
    return %c0_i32, %c0_i32_0 : i32, i32
  }
  func.func @transform_3(%arg0: i32) -> (i32, i32) {
    %c0_i32 = arith.constant 0 : i32
    %c0_i32_0 = arith.constant 0 : i32
    return %arg0, %c0_i32 : i32, i32
  }
  func.func @transform_4(%arg0: i32) -> (i32, i32) {
    %c0_i32 = arith.constant 0 : i32
    %c0_i32_0 = arith.constant 0 : i32
    return %arg0, %c0_i32 : i32, i32
  }
  func.func @transform_5(%arg0: i32) -> (i32, i32) {
    %c0_i32 = arith.constant 0 : i32
    %c0_i32_0 = arith.constant 0 : i32
    return %arg0, %c0_i32 : i32, i32
  }
}

</mosaic_0001>

<llo_original>
// kernel: pcnn_forward.1
$region0: #{pcnn_forward.1}
  #allocation0 [shape = 'u32[]', space=smem, size = 0x4, offset = 0x4, fixed_abs, tag = 'smem constant byte address 0x4 - core index']
  #allocation1 [shape = 'u32[72,128]{1,0:T(1,128)}', space=vmem, size = 0x9000, scoped, tag = 'internal scratch']
  %s0 = inlined_call_operand.vmem [shape: bf16[256,48], index: 0, kind: input, shape index: {}]
  %s1 = inlined_call_operand.vmem [shape: bf16[48,96], index: 1, kind: input, shape index: {}]
  %s2 = inlined_call_operand.vmem [shape: f32[1,96], index: 2, kind: input, shape index: {}]
  %s3 = inlined_call_operand.vmem [shape: s32[16,2], index: 3, kind: input, shape index: {}]
  %s4 = inlined_call_operand.vmem [shape: f32[16,32], index: 4, kind: input, shape index: {}]
  %s5 = inlined_call_operand.hbm [shape: f32[16,128], index: 5, kind: output, shape index: {}]
  %s6 = sld [smem:[#allocation0]]
  $region53: #{pcnn_forward.1} parent=0
    _
  %s8 = ssub.s32 1, %s6
  %s9 = scalar_select 0, %s8, %s6
  $region1: #{pcnn_forward.1} parent=0
    #allocation2 [shape = 'u8[8192]{0}', space=vmem, size = 0x2000, scoped, tag = 'output window, operand 0']
    #allocation3 [shape = 's32[2]{0}', space=sflag, size = 0x8, scoped, tag = 'scoped memory for pcnn_forward.1']
    %10 = vsyncpa [#allocation3], 0
    %s11 = scalar_lea.sflag [#allocation3], 1
    %12 = vsyncpa %s11, 0
    loop: start=0, step=1, limit=4
    $region2: #{pcnn_forward.1} parent=1 // loop_pre_header
      _
    $region3: #{pcnn_forward.1} parent=1 // loop_header
      %s14 = sphi 0, %s18
      %p15 = scmp.ge.s32.totalorder %s14, 4
      %s24 = sphi 0, %s26
      %s27 = sphi 0, %s24
      %s28 = sphi 0, %s27
      %s44 = sphi 0, %s28
      %s48 = sphi 0, %s48
      %s50 = sphi 0, %s48
      %s51 = sphi 0, %s50
      %s65 = sphi 0, %s51
      %s69 = sphi 0, %s69
      %s71 = sphi 0, %s69
      %s72 = sphi 0, %s71
      %s86 = sphi 0, %s72
      %s92 = sphi 0, %s94
      %s95 = sphi 0, %s92
      %s96 = sphi 0, %s95
      %s112 = sphi 0, %s96
      %s118 = sphi 0, %s120
      %s121 = sphi 0, %s118
      %s122 = sphi 0, %s121
      %s138 = sphi 0, %s122
      %s144 = sphi 0, %s146
      %s147 = sphi 0, %s144
      %s148 = sphi 0, %s147
      %s164 = sphi 0, %s148
    $region4: #{pcnn_forward.1} parent=1 // loop_header_branch
      %17 = sbr.rel (%p15) target = $region8
    $region5: #{pcnn_forward.1} parent=1 // loop_body
      %s19 = ssub.s32 %s14, 1
      %s20 = ssub.s32 %s14, 2
      %s21 = sadd.s32 %s14, 1
      %s22 = ssub.s32 %s14, %s21
      %p23 = scmp.eq.s32.totalorder %s22, 0
      %s25 = sadd.s32 %s24, 1
      %s26 = scalar_select %p23, %s24, %s25
      %p29 = pneg %p23
      %p30 = scmp.eq.s32.totalorder %s14, 1
      %p31 = por %p29, %p30
      %p32 = scmp.ne.s32.totalorder %s24, %s27
      %p33 = scmp.eq.s32.totalorder %s14, 0
      %p34 = por %p32, %p33
      %p35 = scmp.ne.s32.totalorder %s24, %s27
      %p36 = scmp.eq.s32.totalorder %s19, 1
      %p37 = por %p35, %p36
      %p38 = scmp.ne.s32.totalorder %s27, %s28
      %p39 = scmp.eq.s32.totalorder %s19, 0
      %p40 = por %p38, %p39
      %p41 = scmp.ne.s32.totalorder %s27, %s28
      %p42 = scmp.eq.s32.totalorder %s20, 1
      %p43 = por %p41, %p42
      %p45 = scmp.ne.s32.totalorder %s28, %s44
      %p46 = scmp.eq.s32.totalorder %s20, 0
      %p47 = por %p45, %p46
      %s49 = sadd.s32 %s48, 1
      %p52 = scmp.eq.s32.totalorder %s14, 1
      %p53 = scmp.ne.s32.totalorder %s48, %s50
      %p54 = scmp.eq.s32.totalorder %s14, 0
      %p55 = por %p53, %p54
      %p56 = scmp.ne.s32.totalorder %s48, %s50
      %p57 = scmp.eq.s32.totalorder %s19, 1
      %p58 = por %p56, %p57
      %p59 = scmp.ne.s32.totalorder %s50, %s51
      %p60 = scmp.eq.s32.totalorder %s19, 0
      %p61 = por %p59, %p60
      %p62 = scmp.ne.s32.totalorder %s50, %s51
      %p63 = scmp.eq.s32.totalorder %s20, 1
      %p64 = por %p62, %p63
      %p66 = scmp.ne.s32.totalorder %s51, %s65
      %p67 = scmp.eq.s32.totalorder %s20, 0
      %p68 = por %p66, %p67
      %s70 = sadd.s32 %s69, 1
      %p73 = scmp.eq.s32.totalorder %s14, 1
      %p74 = scmp.ne.s32.totalorder %s69, %s71
      %p75 = scmp.eq.s32.totalorder %s14, 0
      %p76 = por %p74, %p75
      %p77 = scmp.ne.s32.totalorder %s69, %s71
      %p78 = scmp.eq.s32.totalorder %s19, 1
      %p79 = por %p77, %p78
      %p80 = scmp.ne.s32.totalorder %s71, %s72
      %p81 = scmp.eq.s32.totalorder %s19, 0
      %p82 = por %p80, %p81
      %p83 = scmp.ne.s32.totalorder %s71, %s72
      %p84 = scmp.eq.s32.totalorder %s20, 1
      %p85 = por %p83, %p84
      %p87 = scmp.ne.s32.totalorder %s72, %s86
      %p88 = scmp.eq.s32.totalorder %s20, 0
      %p89 = por %p87, %p88
      %s90 = ssub.s32 %s14, %s21
      %p91 = scmp.eq.s32.totalorder %s90, 0
      %s93 = sadd.s32 %s92, 1
      %s94 = scalar_select %p91, %s92, %s93
      %p97 = pneg %p91
      %p98 = scmp.eq.s32.totalorder %s14, 1
      %p99 = por %p97, %p98
      %p100 = scmp.ne.s32.totalorder %s92, %s95
      %p101 = scmp.eq.s32.totalorder %s14, 0
      %p102 = por %p100, %p101
      %p103 = scmp.ne.s32.totalorder %s92, %s95
      %p104 = scmp.eq.s32.totalorder %s19, 1
      %p105 = por %p103, %p104
      %p106 = scmp.ne.s32.totalorder %s95, %s96
      %p107 = scmp.eq.s32.totalorder %s19, 0
      %p108 = por %p106, %p107
      %p109 = scmp.ne.s32.totalorder %s95, %s96
      %p110 = scmp.eq.s32.totalorder %s20, 1
      %p111 = por %p109, %p110
      %p113 = scmp.ne.s32.totalorder %s96, %s112
      %p114 = scmp.eq.s32.totalorder %s20, 0
      %p115 = por %p113, %p114
      %s116 = ssub.s32 %s14, %s21
      %p117 = scmp.eq.s32.totalorder %s116, 0
      %s119 = sadd.s32 %s118, 1
      %s120 = scalar_select %p117, %s118, %s119
      %p123 = pneg %p117
      %p124 = scmp.eq.s32.totalorder %s14, 1
      %p125 = por %p123, %p124
      %p126 = scmp.ne.s32.totalorder %s118, %s121
      %p127 = scmp.eq.s32.totalorder %s14, 0
      %p128 = por %p126, %p127
      %p129 = scmp.ne.s32.totalorder %s118, %s121
      %p130 = scmp.eq.s32.totalorder %s19, 1
      %p131 = por %p129, %p130
      %p132 = scmp.ne.s32.totalorder %s121, %s122
      %p133 = scmp.eq.s32.totalorder %s19, 0
      %p134 = por %p132, %p133
      %p135 = scmp.ne.s32.totalorder %s121, %s122
      %p136 = scmp.eq.s32.totalorder %s20, 1
      %p137 = por %p135, %p136
      %p139 = scmp.ne.s32.totalorder %s122, %s138
      %p140 = scmp.eq.s32.totalorder %s20, 0
      %p141 = por %p139, %p140
      %s142 = ssub.s32 %s14, %s21
      %p143 = scmp.eq.s32.totalorder %s142, 0
      %s145 = sadd.s32 %s144, 1
      %s146 = scalar_select %p143, %s144, %s145
      %p149 = pneg %p143
      %p150 = scmp.eq.s32.totalorder %s14, 1
      %p151 = por %p149, %p150
      %p152 = scmp.ne.s32.totalorder %s144, %s147
      %p153 = scmp.eq.s32.totalorder %s14, 0
      %p154 = por %p152, %p153
      %p155 = scmp.ne.s32.totalorder %s144, %s147
      %p156 = scmp.eq.s32.totalorder %s19, 1
      %p157 = por %p155, %p156
      %p158 = scmp.ne.s32.totalorder %s147, %s148
      %p159 = scmp.eq.s32.totalorder %s19, 0
      %p160 = por %p158, %p159
      %p161 = scmp.ne.s32.totalorder %s147, %s148
      %p162 = scmp.eq.s32.totalorder %s20, 1
      %p163 = por %p161, %p162
      %p165 = scmp.ne.s32.totalorder %s148, %s164
      %p166 = scmp.eq.s32.totalorder %s20, 0
      %p167 = por %p165, %p166
      %p168 = scmp.le.s32.totalorder 1, %s14
      %p169 = scmp.lt.s32.totalorder %s14, 3
      %p170 = pnand %p168, %p169
      %p171 = pneg %p170
      // Predicated region
      $region9: #{pcnn_forward.1} parent=5 // pred_check
        _
      $region10: #{pcnn_forward.1} parent=5 // pred_check_branch
        %173 = sbr.rel (%p170) target = $region12
      $region11: #{pcnn_forward.1} parent=5 // pred_region
        %s174 = ssub.s32 %s14, 1
        // Predicated region
        $region13: #{pcnn_forward.1} parent=11 // pred_check
          %p175 = pneg %p61
        $region14: #{pcnn_forward.1} parent=11 // pred_check_branch
          %177 = sbr.rel (%p175) target = $region16
        $region15: #{pcnn_forward.1} parent=11 // pred_region
          _
        $region16: #{pcnn_forward.1} parent=11 // pred_fallthru
          _
        // Predicated region
        $region17: #{pcnn_forward.1} parent=11 // pred_check
          %p178 = pneg %p82
        $region18: #{pcnn_forward.1} parent=11 // pred_check_branch
          %180 = sbr.rel (%p178) target = $region20
        $region19: #{pcnn_forward.1} parent=11 // pred_region
          _
        $region20: #{pcnn_forward.1} parent=11 // pred_fallthru
          _
      $region12: #{pcnn_forward.1} parent=5 // pred_fallthru
        _
      %p181 = scmp.lt.s32.totalorder %s14, 2
      // Predicated region
      $region21: #{pcnn_forward.1} parent=5 // pred_check
        %p182 = pneg %p181
      $region22: #{pcnn_forward.1} parent=5 // pred_check_branch
        %184 = sbr.rel (%p182) target = $region24
      $region23: #{pcnn_forward.1} parent=5 // pred_region
        // Predicated region
        $region25: #{pcnn_forward.1} parent=23 // pred_check
          %p185 = pneg %p34
        $region26: #{pcnn_forward.1} parent=23 // pred_check_branch
          %187 = sbr.rel (%p185) target = $region28
        $region27: #{pcnn_forward.1} parent=23 // pred_region
          %s188 = smul.u32 16, %s14
          %p189 = scmp.lt.s32.totalorder %s188, 31
          %s190 = scalar_select %p189, %s188, 31
          %s191 = smul.addr %s190, 4
          %s192 = scalar_lea.vmem %s0, %s191
          %s193 = smul.u32 16, %s14
        $region28: #{pcnn_forward.1} parent=23 // pred_fallthru
          _
        // Predicated region
        $region29: #{pcnn_forward.1} parent=23 // pred_check
          %p194 = pneg %p102
        $region30: #{pcnn_forward.1} parent=23 // pred_check_branch
          %196 = sbr.rel (%p194) target = $region32
        $region31: #{pcnn_forward.1} parent=23 // pred_region
          %p197 = scmp.lt.s32.totalorder %s14, 1
          %s198 = scalar_select %p197, %s14, 1
          %s199 = smul.addr %s198, 8
          %s200 = scalar_lea.vmem %s3, %s199
        $region32: #{pcnn_forward.1} parent=23 // pred_fallthru
          _
        // Predicated region
        $region33: #{pcnn_forward.1} parent=23 // pred_check
          %p201 = pneg %p128
        $region34: #{pcnn_forward.1} parent=23 // pred_check_branch
          %203 = sbr.rel (%p201) target = $region36
        $region35: #{pcnn_forward.1} parent=23 // pred_region
          %p204 = scmp.lt.s32.totalorder %s14, 1
          %s205 = scalar_select %p204, %s14, 1
          %s206 = smul.addr %s205, 8
          %s207 = scalar_lea.vmem %s4, %s206
        $region36: #{pcnn_forward.1} parent=23 // pred_fallthru
          _
      $region24: #{pcnn_forward.1} parent=5 // pred_fallthru
        _
      %p208 = scmp.le.s32.totalorder 1, %s14
      %p209 = scmp.lt.s32.totalorder %s14, 3
      %p210 = pnand %p208, %p209
      %p211 = pneg %p210
      // Predicated region
      $region37: #{pcnn_forward.1} parent=5 // pred_check
        _
      $region38: #{pcnn_forward.1} parent=5 // pred_check_branch
        %213 = sbr.rel (%p210) target = $region40
      $region39: #{pcnn_forward.1} parent=5 // pred_region
        %s214 = ssub.s32 %s14, 1
        %s215 = smul.u32 16, %s19
        %p216 = scmp.lt.s32.totalorder %s215, 31
        %s217 = scalar_select %p216, %s215, 31
        %s218 = smul.addr %s217, 4
        %s219 = scalar_lea.vmem %s0, %s218
        %p220 = pneg %p40
        %p221 = pneg %p37
        %p222 = pneg %p61
        %p223 = pneg %p58
        %p224 = pneg %p82
        %p225 = pneg %p79
        %p226 = scmp.lt.s32.totalorder %s19, 1
        %s227 = scalar_select %p226, %s19, 1
        %s228 = smul.addr %s227, 8
        %s229 = scalar_lea.vmem %s3, %s228
        %p230 = pneg %p108
        %p231 = pneg %p105
        %p232 = scmp.lt.s32.totalorder %s19, 1
        %s233 = scalar_select %p232, %s19, 1
        %s234 = smul.addr %s233, 8
        %s235 = scalar_lea.vmem %s4, %s234
        %p236 = pneg %p134
        %p237 = pneg %p131
        %p238 = pneg %p160
        %p239 = pneg %p157
        %s240 = sand.u32 %s147, 1
        %s241 = scalar_lea.sflag [#allocation3], %s240
        %s242 = sand.u32 %s147, 1
        %s243 = smul.addr %s242, 8
        %s244 = scalar_lea.vmem [#allocation2], %s243
        %s245 = smul.u32 16, %s19
        %p246 = scmp.lt.s32.totalorder %s245, 31
        %s247 = scalar_select %p246, %s245, 31
        %s248 = smul.addr %s247, 4
        %s249 = scalar_lea.vmem %s0, %s248
        %s250 = smul.u32 16, %s19
        %p251 = scmp.lt.s32.totalorder %s19, 1
        %s252 = scalar_select %p251, %s19, 1
        %s253 = smul.addr %s252, 8
        %s254 = scalar_lea.vmem %s3, %s253
        %p255 = scmp.lt.s32.totalorder %s19, 1
        %s256 = scalar_select %p255, %s19, 1
        %s257 = smul.addr %s256, 8
        %s258 = scalar_lea.vmem %s4, %s257
        %v260 = vld [vmem:[%s249] sm:$0xf]
        %v261 = vld [vmem:[%s249 + $0x4] sm:$0xf]
        %v262 = vld [vmem:[%s249 + $0x8] sm:$0xf]
        %v263 = vld [vmem:[%s249 + $0xc] sm:$0xf]
        %v264 = vld [vmem:[%s249 + $0x10] sm:$0xf]
        %v265 = vld [vmem:[%s249 + $0x14] sm:$0xf]
        %v266 = vld [vmem:[%s249 + $0x18] sm:$0xf]
        %v267 = vld [vmem:[%s249 + $0x1c] sm:$0xf]
        %v268 = vld [vmem:[%s249 + $0x20] sm:$0xf]
        %v269 = vld [vmem:[%s249 + $0x24] sm:$0xf]
        %v270 = vld [vmem:[%s249 + $0x28] sm:$0xf]
        %v271 = vld [vmem:[%s249 + $0x2c] sm:$0xf]
        %v272 = vld [vmem:[%s249 + $0x30] sm:$0xf]
        %v273 = vld [vmem:[%s249 + $0x34] sm:$0xf]
        %v274 = vld [vmem:[%s249 + $0x38] sm:$0xf]
        %v275 = vld [vmem:[%s249 + $0x3c] sm:$0xf]
        %v276 = vld [vmem:[%s1] sm:$0xf]
        %v277 = vld [vmem:[%s1 + $0x4] sm:$0xf]
        %v278 = vld [vmem:[%s1 + $0x8] sm:$0xf]
        %v279 = vld [vmem:[%s1 + $0xc] sm:$0xf]
        %v280 = vld [vmem:[%s1 + $0x10] sm:$0xf]
        %v281 = vld [vmem:[%s1 + $0x14] sm:$0xf]
        %v298 = vunpack.c.l.b16 %v260
        %v299 = vunpack.c.l.b16 %v261
        %v300 = vunpack.c.l.b16 %v262
        %v301 = vunpack.c.l.b16 %v263
        %v302 = vunpack.c.l.b16 %v264
        %v303 = vunpack.c.l.b16 %v265
        %v304 = vunpack.c.l.b16 %v266
        %v305 = vunpack.c.l.b16 %v267
        %v306 = vunpack.c.l.b16 %v268
        %v307 = vunpack.c.l.b16 %v269
        %v308 = vunpack.c.l.b16 %v270
        %v309 = vunpack.c.l.b16 %v271
        %v310 = vunpack.c.l.b16 %v272
        %v311 = vunpack.c.l.b16 %v273
        %v312 = vunpack.c.l.b16 %v274
        %v313 = vunpack.c.l.b16 %v275
        %v314 = vpack.c.b16 %v299, %v298
        %v315 = vpack.c.b16 %v301, %v300
        %v316 = vpack.c.b16 %v303, %v302
        %v317 = vpack.c.b16 %v305, %v304
        %v318 = vpack.c.b16 %v307, %v306
        %v319 = vpack.c.b16 %v309, %v308
        %v320 = vpack.c.b16 %v311, %v310
        %v321 = vpack.c.b16 %v313, %v312
        %v328 = vunpack.c.l.b16 %v276
        %v329 = vunpack.c.l.b16 %v277
        %v330 = vunpack.c.l.b16 %v278
        %v331 = vunpack.c.l.b16 %v279
        %v332 = vunpack.c.l.b16 %v280
        %v333 = vunpack.c.l.b16 %v281
        %v334 = vpack.c.b16 %v329, %v328
        %v335 = vpack.c.b16 %v331, %v330
        %v336 = vpack.c.b16 %v333, %v332
        %vm340 = vcmask 392192
        %v342 = vsel %vm340, %v314, 0
        %v345 = vsel %vm340, %v315, 0
        %v348 = vsel %vm340, %v316, 0
        %v351 = vsel %vm340, %v317, 0
        %v354 = vsel %vm340, %v318, 0
        %v357 = vsel %vm340, %v319, 0
        %v360 = vsel %vm340, %v320, 0
        %v363 = vsel %vm340, %v321, 0
        %365 = vmatpush.bf16.msra.mxu0 0
        %366 = vmatpush.bf16.msra.mxu0 0
        %367 = vmatpush.bf16.msra.mxu0 0
        %368 = vmatpush.bf16.msra.mxu0 0
        %369 = vmatpush.bf16.msra.mxu0 0
        %370 = vmatpush.bf16.msra.mxu0 %v336
        %371 = vmatpush.bf16.msra.mxu0 %v335
        %372 = vmatpush.bf16.msra.mxu0 %v334
        %373 = vmatmul.bf16.gmra.mxu0 %v342
        %v374 = vpop.f32.mrf.mxu0
        %v375 = vadd.f32 0.0, %v374
        %v376 = vpop.f32.mrf.mxu0
        %v377 = vadd.f32 0.0, %v376
        %378 = vmatmul.bf16.gmra.mxu0 %v345
        %v379 = vpop.f32.mrf.mxu0
        %v380 = vadd.f32 0.0, %v379
        %v381 = vpop.f32.mrf.mxu0
        %v382 = vadd.f32 0.0, %v381
        %383 = vmatmul.bf16.gmra.mxu0 %v348
        %v384 = vpop.f32.mrf.mxu0
        %v385 = vadd.f32 0.0, %v384
        %v386 = vpop.f32.mrf.mxu0
        %v387 = vadd.f32 0.0, %v386
        %388 = vmatmul.bf16.gmra.mxu0 %v351
        %v389 = vpop.f32.mrf.mxu0
        %v390 = vadd.f32 0.0, %v389
        %v391 = vpop.f32.mrf.mxu0
        %v392 = vadd.f32 0.0, %v391
        %393 = vmatmul.bf16.gmra.mxu0 %v354
        %v394 = vpop.f32.mrf.mxu0
        %v395 = vadd.f32 0.0, %v394
        %v396 = vpop.f32.mrf.mxu0
        %v397 = vadd.f32 0.0, %v396
        %398 = vmatmul.bf16.gmra.mxu0 %v357
        %v399 = vpop.f32.mrf.mxu0
        %v400 = vadd.f32 0.0, %v399
        %v401 = vpop.f32.mrf.mxu0
        %v402 = vadd.f32 0.0, %v401
        %403 = vmatmul.bf16.gmra.mxu0 %v360
        %v404 = vpop.f32.mrf.mxu0
        %v405 = vadd.f32 0.0, %v404
        %v406 = vpop.f32.mrf.mxu0
        %v407 = vadd.f32 0.0, %v406
        %408 = vmatmul.bf16.gmra.mxu0 %v363
        %v409 = vpop.f32.mrf.mxu0
        %v410 = vadd.f32 0.0, %v409
        %v411 = vpop.f32.mrf.mxu0
        %v412 = vadd.f32 0.0, %v411
        %413 = vdwg.mxu0
        %v414 = vlaneseq
        %v415 = vand.u32 %v414, 127
        %v416 = vld [vmem:[%s254] sm:$0xff]
        %417 = vset.pattern.permute.xlu0 0
        %418 = vperm.xlu0 %417, %v416
        %v419 = vpop.permute.xlu0 %418
        %vm420 = vcmp.ge.s32.totalorder %v415, %v419
        %v421 = vsel %vm420, 1, 0
        %422 = vset.pattern.permute.xlu0 1
        %423 = vperm.xlu0 %422, %v416
        %v424 = vpop.permute.xlu0 %423
        %vm425 = vcmp.ge.s32.totalorder %v415, %v424
        %v426 = vsel %vm425, 1, 0
        %v427 = vadd.s32 %v421, %v426
        %vm428 = vcmp.lt.s32.totalorder %v415, 0
        %v429 = vsub.s32 0, %v415
        %v430 = vsel %vm428, %v429, %v415
        %v431 = vand.u32 %v430, 65535
        %v432 = vshrl.u32 %v430, 16
        %v434 = vmul.u32 %v431, 43691
        %v435 = vmul.u32 %v431, 43690
        %v436 = vmul.u32 %v432, 43691
        %v437 = vmul.u32 %v432, 43690
        %v438 = vshll.u32 %v435, 16
        %v439 = vshrl.u32 %v435, 16
        %v440 = vshll.u32 %v436, 16
        %v441 = vshrl.u32 %v436, 16
        %vm442 = vc.u32 %v434, %v438
        %v443 = vsel %vm442, 1, 0
        %v444 = vadd.s32 %v434, %v438
        %v445 = vadd.s32 %v437, %v443
        %vm446 = vc.u32 %v444, %v440
        %v447 = vsel %vm446, 1, 0
        %v448 = vadd.s32 %v444, %v440
        %v449 = vadd.s32 %v445, %v447
        %v450 = vadd.s32 %v449, %v439
        %v451 = vadd.s32 %v450, %v441
        %v452 = vshrl.u32 %v451, 1
        %v453 = vmul.u32 %v452, 3
        %v454 = vsub.s32 %v430, %v453
        %v455 = vsub.s32 0, %v454
        %v456 = vsel %vm428, %v455, %v454
        %vm457 = vcmp.ne.s32.totalorder %v456, 0
        %vm458 = vcmp.lt.s32.totalorder %v456, 0
        %vm459 = vmand %vm458, %vm457
        %v460 = vadd.s32 %v456, 3
        %v461 = vsel %vm459, %v460, %v456
        %v462 = vperm.slane %v427, 0
        %v463 = vlaneseq
        %v464 = vshrl.u32 %v463, 7
        %466 = vset.pattern.permute.xlu0 %v464
        %467 = vperm.xlu0 %466, %v462
        %v468 = vpop.permute.xlu0 %467
        %v469 = vlaneseq
        %v470 = vshrl.u32 %v469, 7
        %v471 = vadd.s32 %v470, 8
        %472 = vset.pattern.permute.xlu0 %v471
        %473 = vperm.xlu0 %472, %v462
        %v474 = vpop.permute.xlu0 %473
        %v475 = vperm.slane %v427, 1
        %v476 = vlaneseq
        %v477 = vshrl.u32 %v476, 7
        %479 = vset.pattern.permute.xlu0 %v477
        %480 = vperm.xlu0 %479, %v475
        %v481 = vpop.permute.xlu0 %480
        %v482 = vlaneseq
        %v483 = vshrl.u32 %v482, 7
        %v484 = vadd.s32 %v483, 8
        %485 = vset.pattern.permute.xlu0 %v484
        %486 = vperm.xlu0 %485, %v475
        %v487 = vpop.permute.xlu0 %486
        %v488 = vperm.slane %v427, 2
        %v489 = vlaneseq
        %v490 = vshrl.u32 %v489, 7
        %492 = vset.pattern.permute.xlu0 %v490
        %493 = vperm.xlu0 %492, %v488
        %v494 = vpop.permute.xlu0 %493
        %v495 = vlaneseq
        %v496 = vshrl.u32 %v495, 7
        %v497 = vadd.s32 %v496, 8
        %498 = vset.pattern.permute.xlu0 %v497
        %499 = vperm.xlu0 %498, %v488
        %v500 = vpop.permute.xlu0 %499
        %v501 = vperm.slane %v427, 3
        %v502 = vlaneseq
        %v503 = vshrl.u32 %v502, 7
        %505 = vset.pattern.permute.xlu0 %v503
        %506 = vperm.xlu0 %505, %v501
        %v507 = vpop.permute.xlu0 %506
        %v508 = vlaneseq
        %v509 = vshrl.u32 %v508, 7
        %v510 = vadd.s32 %v509, 8
        %511 = vset.pattern.permute.xlu0 %v510
        %512 = vperm.xlu0 %511, %v501
        %v513 = vpop.permute.xlu0 %512
        %v514 = vperm.slane %v427, 4
        %v515 = vlaneseq
        %v516 = vshrl.u32 %v515, 7
        %518 = vset.pattern.permute.xlu0 %v516
        %519 = vperm.xlu0 %518, %v514
        %v520 = vpop.permute.xlu0 %519
        %v521 = vlaneseq
        %v522 = vshrl.u32 %v521, 7
        %v523 = vadd.s32 %v522, 8
        %524 = vset.pattern.permute.xlu0 %v523
        %525 = vperm.xlu0 %524, %v514
        %v526 = vpop.permute.xlu0 %525
        %v527 = vperm.slane %v427, 5
        %v528 = vlaneseq
        %v529 = vshrl.u32 %v528, 7
        %531 = vset.pattern.permute.xlu0 %v529
        %532 = vperm.xlu0 %531, %v527
        %v533 = vpop.permute.xlu0 %532
        %v534 = vlaneseq
        %v535 = vshrl.u32 %v534, 7
        %v536 = vadd.s32 %v535, 8
        %537 = vset.pattern.permute.xlu0 %v536
        %538 = vperm.xlu0 %537, %v527
        %v539 = vpop.permute.xlu0 %538
        %v540 = vperm.slane %v427, 6
        %v541 = vlaneseq
        %v542 = vshrl.u32 %v541, 7
        %544 = vset.pattern.permute.xlu0 %v542
        %545 = vperm.xlu0 %544, %v540
        %v546 = vpop.permute.xlu0 %545
        %v547 = vlaneseq
        %v548 = vshrl.u32 %v547, 7
        %v549 = vadd.s32 %v548, 8
        %550 = vset.pattern.permute.xlu0 %v549
        %551 = vperm.xlu0 %550, %v540
        %v552 = vpop.permute.xlu0 %551
        %v553 = vperm.slane %v427, 7
        %v554 = vlaneseq
        %v555 = vshrl.u32 %v554, 7
        %557 = vset.pattern.permute.xlu0 %v555
        %558 = vperm.xlu0 %557, %v553
        %v559 = vpop.permute.xlu0 %558
        %v560 = vlaneseq
        %v561 = vshrl.u32 %v560, 7
        %v562 = vadd.s32 %v561, 8
        %563 = vset.pattern.permute.xlu0 %v562
        %564 = vperm.xlu0 %563, %v553
        %v565 = vpop.permute.xlu0 %564
        %vm566 = vcmp.eq.s32.totalorder %v468, %v461
        %vm567 = vcmp.eq.s32.totalorder %v474, %v461
        %vm568 = vcmp.eq.s32.totalorder %v481, %v461
        %vm569 = vcmp.eq.s32.totalorder %v487, %v461
        %vm570 = vcmp.eq.s32.totalorder %v494, %v461
        %vm571 = vcmp.eq.s32.totalorder %v500, %v461
        %vm572 = vcmp.eq.s32.totalorder %v507, %v461
        %vm573 = vcmp.eq.s32.totalorder %v513, %v461
        %vm574 = vcmp.eq.s32.totalorder %v520, %v461
        %vm575 = vcmp.eq.s32.totalorder %v526, %v461
        %vm576 = vcmp.eq.s32.totalorder %v533, %v461
        %vm577 = vcmp.eq.s32.totalorder %v539, %v461
        %vm578 = vcmp.eq.s32.totalorder %v546, %v461
        %vm579 = vcmp.eq.s32.totalorder %v552, %v461
        %vm580 = vcmp.eq.s32.totalorder %v559, %v461
        %vm581 = vcmp.eq.s32.totalorder %v565, %v461
        %v582 = vsel %vm566, 100.0, 0.0
        %v583 = vsel %vm567, 100.0, 0.0
        %v584 = vsel %vm568, 100.0, 0.0
        %v585 = vsel %vm569, 100.0, 0.0
        %v586 = vsel %vm570, 100.0, 0.0
        %v587 = vsel %vm571, 100.0, 0.0
        %v588 = vsel %vm572, 100.0, 0.0
        %v589 = vsel %vm573, 100.0, 0.0
        %v590 = vsel %vm574, 100.0, 0.0
        %v591 = vsel %vm575, 100.0, 0.0
        %v592 = vsel %vm576, 100.0, 0.0
        %v593 = vsel %vm577, 100.0, 0.0
        %v594 = vsel %vm578, 100.0, 0.0
        %v595 = vsel %vm579, 100.0, 0.0
        %v596 = vsel %vm580, 100.0, 0.0
        %v597 = vsel %vm581, 100.0, 0.0
        %v598 = vadd.f32 %v375, %v582
        %v599 = vadd.f32 %v377, %v583
        %v600 = vadd.f32 %v380, %v584
        %v601 = vadd.f32 %v382, %v585
        %v602 = vadd.f32 %v385, %v586
        %v603 = vadd.f32 %v387, %v587
        %v604 = vadd.f32 %v390, %v588
        %v605 = vadd.f32 %v392, %v589
        %v606 = vadd.f32 %v395, %v590
        %v607 = vadd.f32 %v397, %v591
        %v608 = vadd.f32 %v400, %v592
        %v609 = vadd.f32 %v402, %v593
        %v610 = vadd.f32 %v405, %v594
        %v611 = vadd.f32 %v407, %v595
        %v612 = vadd.f32 %v410, %v596
        %v613 = vadd.f32 %v412, %v597
        %vm614 = vcmask 785408
        %v615 = vsel %vm614, %v598, -inf
        %v616 = vsel %vm614, %v599, -inf
        %v617 = vmax.f32 %v615, %v616
        %v618 = vrot.slane %v617, 4
        %v619 = vmax.f32 %v617, %v618
        %v620 = vrot.slane %v619, 2
        %v621 = vmax.f32 %v619, %v620
        %v622 = vrot.slane %v621, 1
        %v623 = vmax.f32 %v621, %v622
        %v624 = vsel %vm614, %v600, -inf
        %v625 = vsel %vm614, %v601, -inf
        %v626 = vmax.f32 %v624, %v625
        %v627 = vrot.slane %v626, 4
        %v628 = vmax.f32 %v626, %v627
        %v629 = vrot.slane %v628, 2
        %v630 = vmax.f32 %v628, %v629
        %v631 = vrot.slane %v630, 1
        %v632 = vmax.f32 %v630, %v631
        %v633 = vsel %vm614, %v602, -inf
        %v634 = vsel %vm614, %v603, -inf
        %v635 = vmax.f32 %v633, %v634
        %v636 = vrot.slane %v635, 4
        %v637 = vmax.f32 %v635, %v636
        %v638 = vrot.slane %v637, 2
        %v639 = vmax.f32 %v637, %v638
        %v640 = vrot.slane %v639, 1
        %v641 = vmax.f32 %v639, %v640
        %v642 = vsel %vm614, %v604, -inf
        %v643 = vsel %vm614, %v605, -inf
        %v644 = vmax.f32 %v642, %v643
        %v645 = vrot.slane %v644, 4
        %v646 = vmax.f32 %v644, %v645
        %v647 = vrot.slane %v646, 2
        %v648 = vmax.f32 %v646, %v647
        %v649 = vrot.slane %v648, 1
        %v650 = vmax.f32 %v648, %v649
        %v651 = vsel %vm614, %v606, -inf
        %v652 = vsel %vm614, %v607, -inf
        %v653 = vmax.f32 %v651, %v652
        %v654 = vrot.slane %v653, 4
        %v655 = vmax.f32 %v653, %v654
        %v656 = vrot.slane %v655, 2
        %v657 = vmax.f32 %v655, %v656
        %v658 = vrot.slane %v657, 1
        %v659 = vmax.f32 %v657, %v658
        %v660 = vsel %vm614, %v608, -inf
        %v661 = vsel %vm614, %v609, -inf
        %v662 = vmax.f32 %v660, %v661
        %v663 = vrot.slane %v662, 4
        %v664 = vmax.f32 %v662, %v663
        %v665 = vrot.slane %v664, 2
        %v666 = vmax.f32 %v664, %v665
        %v667 = vrot.slane %v666, 1
        %v668 = vmax.f32 %v666, %v667
        %v669 = vsel %vm614, %v610, -inf
        %v670 = vsel %vm614, %v611, -inf
        %v671 = vmax.f32 %v669, %v670
        %v672 = vrot.slane %v671, 4
        %v673 = vmax.f32 %v671, %v672
        %v674 = vrot.slane %v673, 2
        %v675 = vmax.f32 %v673, %v674
        %v676 = vrot.slane %v675, 1
        %v677 = vmax.f32 %v675, %v676
        %v678 = vsel %vm614, %v612, -inf
        %v679 = vsel %vm614, %v613, -inf
        %v680 = vmax.f32 %v678, %v679
        %v681 = vrot.slane %v680, 4
        %v682 = vmax.f32 %v680, %v681
        %v683 = vrot.slane %v682, 2
        %v684 = vmax.f32 %v682, %v683
        %v685 = vrot.slane %v684, 1
        %v686 = vmax.f32 %v684, %v685
        %v687 = vsub.f32 %v623, 100.0
        %v688 = vsub.f32 %v632, 100.0
        %v689 = vsub.f32 %v641, 100.0
        %v690 = vsub.f32 %v650, 100.0
        %v691 = vsub.f32 %v659, 100.0
        %v692 = vsub.f32 %v668, 100.0
        %v693 = vsub.f32 %v677, 100.0
        %v694 = vsub.f32 %v686, 100.0
        %v695 = vld [vmem:[%s2] sm:$0x1]
        %v697 = vperm.slane %v695, 0
        %v699 = vadd.f32 %v687, %v697
        %v700 = vadd.f32 %v688, %v697
        %v701 = vadd.f32 %v689, %v697
        %v702 = vadd.f32 %v690, %v697
        %v703 = vadd.f32 %v691, %v697
        %v704 = vadd.f32 %v692, %v697
        %v705 = vadd.f32 %v693, %v697
        %v706 = vadd.f32 %v694, %v697
        %v707 = vld [vmem:[%s258] sm:$0xff]
        %v716 = vrot.slane %v700, 7
        %vm717 = vcmask 1041409
        %v718 = vsel %vm717, %v716, %v699
        %v719 = vrot.slane %v701, 6
        %vm720 = vcmask 1042434
        %v721 = vsel %vm720, %v719, %v718
        %v722 = vrot.slane %v702, 5
        %vm723 = vcmask 1043459
        %v724 = vsel %vm723, %v722, %v721
        %v725 = vrot.slane %v703, 4
        %vm726 = vcmask 1044484
        %v727 = vsel %vm726, %v725, %v724
        %v728 = vrot.slane %v704, 3
        %vm729 = vcmask 1045509
        %v730 = vsel %vm729, %v728, %v727
        %v731 = vrot.slane %v705, 2
        %vm732 = vcmask 1046534
        %v733 = vsel %vm732, %v731, %v730
        %v734 = vrot.slane %v706, 1
        %vm735 = vcmask 1047559
        %v736 = vsel %vm735, %v734, %v733
        %739 = vrot.lane.b32.xlu0 %v707, 96
        %v740 = vpop.permute.xlu0 %739
        %v742 = vsel %vm614, %v736, %v740
        %v743 = vmax.f32 %v742, 0.0
        %744 = vst [vmem:[%s244] sm:$0xff] %v743
        %s745 = sand.u32 %s147, 1
        %s746 = scalar_lea.sflag [#allocation3], %s745
        %s747 = sand.u32 %s147, 1
        %s748 = smul.addr %s747, 8
        %s749 = scalar_lea.vmem [#allocation2], %s748
        // Predicated region
        $region41: #{pcnn_forward.1} parent=39 // pred_check
          %p750 = pneg %p157
        $region42: #{pcnn_forward.1} parent=39 // pred_check_branch
          %752 = sbr.rel (%p750) target = $region44
        $region43: #{pcnn_forward.1} parent=39 // pred_region
          %754 = vsyncadd %s746, 0
          %s755 = smul.addr %s19, 8
          %s756 = scalar_lea.hbm %s5, %s755
          %s758 = sshll.u32 %s749, 4
          %s759 = int_to_ptr.vmem [resolvable:$true] %s758
          %s760 = sshll.u32 %s756, 4
          %s761 = int_to_ptr.hbm [resolvable:$true] %s760
          %763 = dma.vmem_to_hbm [thread:$0]  %s759, 128, %s761, %s746
        $region44: #{pcnn_forward.1} parent=39 // pred_fallthru
          _
      $region40: #{pcnn_forward.1} parent=5 // pred_fallthru
        _
      %p764 = scmp.le.s32.totalorder 2, %s14
      // Predicated region
      $region45: #{pcnn_forward.1} parent=5 // pred_check
        %p765 = pneg %p764
      $region46: #{pcnn_forward.1} parent=5 // pred_check_branch
        %767 = sbr.rel (%p765) target = $region48
      $region47: #{pcnn_forward.1} parent=5 // pred_region
        %s768 = ssub.s32 %s14, 2
        // Predicated region
        $region49: #{pcnn_forward.1} parent=47 // pred_check
          %p769 = pneg %p163
        $region50: #{pcnn_forward.1} parent=47 // pred_check_branch
          %771 = sbr.rel (%p769) target = $region52
        $region51: #{pcnn_forward.1} parent=47 // pred_region
          %s772 = sand.u32 %s148, 1
          %s773 = scalar_lea.sflag [#allocation3], %s772
          %s774 = sand.u32 %s148, 1
          %s775 = smul.addr %s774, 8
          %s776 = scalar_lea.vmem [#allocation2], %s775
          %778 = dma.done %s773, 128
        $region52: #{pcnn_forward.1} parent=47 // pred_fallthru
          _
      $region48: #{pcnn_forward.1} parent=5 // pred_fallthru
        _
    $region6: #{pcnn_forward.1} parent=1 // loop_footer
      %s18 = sadd.s32 1, %s14
    $region7: #{pcnn_forward.1} parent=1 // loop_footer_branch
      %13 = sbr.rel target = $region3
    $region8: #{pcnn_forward.1} parent=1 // loop_exit
      _
    %779 = vsyncpa [#allocation3], 1
    %s780 = scalar_lea.sflag [#allocation3], 1
    %781 = vsyncpa %s780, 1

</llo_original>
